<compile_context>
chip_gen: v7x
topology: tpu7x:2x2x1
jax: 0.10.0
libtpu: 0.0.40
codegen_flags: <defaults>
</compile_context>

<pallas_src>
import functools

import jax
import jax.numpy as jnp
from jax.experimental import pallas as pl
from jax.experimental.pallas import tpu as pltpu


def _round_up(x, m):
    return ((x + m - 1) // m) * m


# ----------------------------- Pallas kernel -------------------------------- #

def _visit_embedding_kernel(codes_ref, table_ref, out_ref, acc_ref):
    # codes:(tm, C) int32   table:(tv, D) bf16   out:(tm, D) f32   acc:(tm, D) f32 scratch
    k = pl.program_id(1)

    @pl.when(k == 0)
    def _():
        acc_ref[...] = jnp.zeros_like(acc_ref)

    codes = codes_ref[...]
    tm, C = codes.shape
    tv = table_ref.shape[0]

    # vocab ids covered by this vocab tile; (1, tv), broadcast inside the compare.
    v_ids = k * tv + jax.lax.broadcasted_iota(jnp.int32, (1, tv), 1)

    # Per-visit vocab-count rows.  No per-c validity masking / n_valid here: pad codes
    # (id 0) hit table row 0 which the wrapper zeroed, so they contribute nothing.
    # Counts are built in f32 (v5e has no bf16 VALU) and cast to bf16 once for the MXU.
    counts = jnp.zeros((tm, tv), jnp.float32)
    for c in range(C):
        counts = counts + (codes[:, c:c + 1] == v_ids).astype(jnp.float32)

    acc_ref[...] += jnp.dot(counts.astype(jnp.bfloat16), table_ref[...],
                            preferred_element_type=jnp.float32)

    @pl.when(k == pl.num_programs(1) - 1)
    def _():
        # masked mean: num valid codes, clamped num==0 -> 1.  Codes past visit_len were
        # zeroed in the wrapper, so padded visits end up exactly 0 (== trailing mask).
        n_valid = jnp.sum((codes > 0).astype(jnp.float32), axis=1, keepdims=True)
        inv = pl.reciprocal(jnp.maximum(n_valid, 1.0), approx=True)
        out_ref[...] = acc_ref[...] * inv


# ----------------------------- kernel wrapper -------------------------------- #

def visit_embedding(code_embeddings, visit_codes, visit_lens, max_visit_len,
                    row_tile=256, vocab_tile=512):
    """Pallas VisitEmbedding forward. Returns (B, max_visit_len, D) float32.

    row_tile:   tile over flattened (B*L).  128-256 on v5e/v7x, 256-512 on v6e.
                (On v7x pick it so (B*L)//row_tile is even so both TCs are fed.)
    vocab_tile: tile over the vocab reduction axis (bounds VMEM independent of V).
    """
    V, D = code_embeddings.shape
    B, L, C = visit_codes.shape
    assert L == max_visit_len
    M = B * L

    # Fold the visit-length mask into the codes: positions >= visit_len become pad (0).
    pos = jnp.arange(L, dtype=jnp.int32)[None, :, None]
    codes = jnp.where(pos < visit_lens[:, None, None].astype(jnp.int32), visit_codes, 0)
    codes = codes.reshape(M, C).astype(jnp.int32)

    # bf16 table with the pad row zeroed: pad codes contribute nothing to counts @ table.
    table = code_embeddings.astype(jnp.bfloat16).at[0, :].set(0)

    # Row tile over the flattened token dim (never the whole M); pad M to a tile multiple.
    tm = max(8, (min(row_tile, _round_up(M, 8)) // 8) * 8)
    M_pad = _round_up(M, tm)
    if M_pad != M:
        codes = jnp.pad(codes, ((0, M_pad - M), (0, 0)))      # pad rows -> all-zero output

    # Vocab tile (reduction axis); pad V to a tile multiple with zero rows.
    tv = max(128, (min(vocab_tile, _round_up(V, 128)) // 128) * 128)
    V_pad = _round_up(V, tv)
    if V_pad != V:
        table = jnp.pad(table, ((0, V_pad - V), (0, 0)))

    grid = (M_pad // tm, V_pad // tv)   # (rows: parallel, vocab: arbitrary/reduction last)

    out = pl.pallas_call(
        _visit_embedding_kernel,
        out_shape=jax.ShapeDtypeStruct((M_pad, D), jnp.float32),
        grid=grid,
        in_specs=[
            pl.BlockSpec((tm, C), lambda i, k: (i, 0)),   # codes tile (constant over k)
            pl.BlockSpec((tv, D), lambda i, k: (k, 0)),   # vocab-tile of the table
        ],
        out_specs=pl.BlockSpec((tm, D), lambda i, k: (i, 0)),
        scratch_shapes=[pltpu.VMEM((tm, D), jnp.float32)],
        compiler_params=pltpu.CompilerParams(
            dimension_semantics=("parallel", "arbitrary"),
            vmem_limit_bytes=64 * 1024 * 1024),
    )(codes, table)
    return out[:M].reshape(B, L, D)


# ----------------------------- pure-JAX reference ----------------------------- #

def ref_visit_embedding(code_embeddings, visit_codes, visit_lens, max_visit_len):
    emb = code_embeddings[visit_codes]                               # (B, L, C, D)
    code_mask = (visit_codes > 0).astype(emb.dtype)[..., None]
    emb = emb * code_mask
    num = jnp.sum((visit_codes > 0).astype(emb.dtype), axis=-1, keepdims=True)
    num = jnp.where(num == 0, 1.0, num)
    visits = jnp.sum(emb, axis=-2) / num
    vmask = (jnp.arange(max_visit_len)[None, :] < visit_lens[:, None]).astype(emb.dtype)
    return visits * vmask[..., None]


# ------------------------------------ main ------------------------------------ #

if __name__ == "__main__":
    # batch, max_visit_len, codes per visit, vocab size (0 = pad), embedding dim
    B, L, C, V, D = 2, 8, 16, 128, 128

    key = jax.random.PRNGKey(0)
    kt, kc = jax.random.split(key)
    code_embeddings = jax.random.normal(kt, (V, D), jnp.float32) * 0.5
    visit_codes = jax.random.randint(kc, (B, L, C), 0, V, dtype=jnp.int32)
    visit_codes = visit_codes.at[0, 3, :].set(0)     # a visit with zero valid codes
                                                     # (exercises the num==0 -> 1 clamp)
    visit_codes = visit_codes.at[1, 5:, :].set(0)    # codes past visit_len are padding
    visit_lens = jnp.array([L, 5], dtype=jnp.int32)

    out = visit_embedding(code_embeddings, visit_codes, visit_lens, max_visit_len=L)
    out = jax.block_until_ready(out)

    ref = ref_visit_embedding(code_embeddings, visit_codes, visit_lens, L)
    assert out.shape == (B, L, D)
    assert bool(jnp.all(jnp.isfinite(out)))
    # tolerance covers the intentional bf16 table / bf16 MXU pass + approx reciprocal
    assert bool(jnp.allclose(out, ref, atol=1e-2, rtol=1e-2))
    print("KERNEL_OK")
</pallas_src>

<mosaic_0001>
module attributes {stable_mosaic.version = 11 : i64} {
  func.func @_visit_embedding_kernel(%arg0: i32, %arg1: i32, %arg2: memref<16x16xi32, #tpu.memory_space<vmem>>, %arg3: memref<128x128xbf16, #tpu.memory_space<vmem>>, %arg4: memref<16x128xf32, #tpu.memory_space<vmem>>, %arg5: memref<16x128xf32, #tpu.memory_space<vmem>>) attributes {dimension_semantics = [#tpu.dimension_semantics<parallel>, #tpu.dimension_semantics<arbitrary>], iteration_bounds = array<i64: 1, 1>, scalar_prefetch = 0 : i64, scratch_operands = 1 : i64, tpu.core_type = #tpu.core_type<tc>, window_params = [{transform_indices = @transform_0, window_bounds = array<i64: 16, 16>}, {transform_indices = @transform_1, window_bounds = array<i64: 128, 128>}, {transform_indices = @transform_2, window_bounds = array<i64: 16, 128>}]} {
    %c0_i32 = arith.constant 0 : i32
    %0 = arith.cmpi eq, %arg1, %c0_i32 : i32
    %1 = arith.extui %0 : i1 to i32
    %c0_i32_0 = arith.constant 0 : i32
    %2 = arith.cmpi ne, %1, %c0_i32_0 : i32
    scf.if %2 {
      %cst_11 = arith.constant 0.000000e+00 : f32
      %130 = vector.broadcast %cst_11 : f32 to vector<16x128xf32>
      %c0_12 = arith.constant 0 : index
      %c0_13 = arith.constant 0 : index
      %131 = vector.load %arg5[%c0_12, %c0_13] : memref<16x128xf32, #tpu.memory_space<vmem>>, vector<16x128xf32>
      tpu.vector_store %arg5[%c0_12, %c0_13], %130 {strides = array<i32>} : memref<16x128xf32, #tpu.memory_space<vmem>>, vector<16x128xf32>,
    } else {
    }
    %c0 = arith.constant 0 : index
    %c0_1 = arith.constant 0 : index
    %3 = vector.load %arg2[%c0, %c0_1] : memref<16x16xi32, #tpu.memory_space<vmem>>, vector<16x16xi32>
    %c128_i32 = arith.constant 128 : i32
    %4 = arith.muli %arg1, %c128_i32 : i32
    %5 = tpu.iota {dimensions = array<i32: 1>} : vector<1x128xi32>
    %6 = vector.broadcast %4 : i32 to vector<1x128xi32>
    %7 = arith.addi %6, %5 : vector<1x128xi32>
    %cst = arith.constant 0.000000e+00 : f32
    %8 = vector.broadcast %cst : f32 to vector<16x128xf32>
    %9 = vector.extract_strided_slice %3 {offsets = [0, 0], sizes = [16, 1], strides = [1, 1]} : vector<16x16xi32> to vector<16x1xi32>
    %10 = vector.broadcast %9 : vector<16x1xi32> to vector<16x128xi32>
    %11 = vector.broadcast %7 : vector<1x128xi32> to vector<16x128xi32>
    %12 = arith.cmpi eq, %10, %11 : vector<16x128xi32>
    %13 = arith.extui %12 : vector<16x128xi1> to vector<16x128xi32>
    %14 = arith.sitofp %13 : vector<16x128xi32> to vector<16x128xf32>
    %15 = arith.addf %8, %14 : vector<16x128xf32>
    %16 = vector.extract_strided_slice %3 {offsets = [0, 1], sizes = [16, 1], strides = [1, 1]} : vector<16x16xi32> to vector<16x1xi32>
    %17 = vector.broadcast %16 : vector<16x1xi32> to vector<16x128xi32>
    %18 = vector.broadcast %7 : vector<1x128xi32> to vector<16x128xi32>
    %19 = arith.cmpi eq, %17, %18 : vector<16x128xi32>
    %20 = arith.extui %19 : vector<16x128xi1> to vector<16x128xi32>
    %21 = arith.sitofp %20 : vector<16x128xi32> to vector<16x128xf32>
    %22 = arith.addf %15, %21 : vector<16x128xf32>
    %23 = vector.extract_strided_slice %3 {offsets = [0, 2], sizes = [16, 1], strides = [1, 1]} : vector<16x16xi32> to vector<16x1xi32>
    %24 = vector.broadcast %23 : vector<16x1xi32> to vector<16x128xi32>
    %25 = vector.broadcast %7 : vector<1x128xi32> to vector<16x128xi32>
    %26 = arith.cmpi eq, %24, %25 : vector<16x128xi32>
    %27 = arith.extui %26 : vector<16x128xi1> to vector<16x128xi32>
    %28 = arith.sitofp %27 : vector<16x128xi32> to vector<16x128xf32>
    %29 = arith.addf %22, %28 : vector<16x128xf32>
    %30 = vector.extract_strided_slice %3 {offsets = [0, 3], sizes = [16, 1], strides = [1, 1]} : vector<16x16xi32> to vector<16x1xi32>
    %31 = vector.broadcast %30 : vector<16x1xi32> to vector<16x128xi32>
    %32 = vector.broadcast %7 : vector<1x128xi32> to vector<16x128xi32>
    %33 = arith.cmpi eq, %31, %32 : vector<16x128xi32>
    %34 = arith.extui %33 : vector<16x128xi1> to vector<16x128xi32>
    %35 = arith.sitofp %34 : vector<16x128xi32> to vector<16x128xf32>
    %36 = arith.addf %29, %35 : vector<16x128xf32>
    %37 = vector.extract_strided_slice %3 {offsets = [0, 4], sizes = [16, 1], strides = [1, 1]} : vector<16x16xi32> to vector<16x1xi32>
    %38 = vector.broadcast %37 : vector<16x1xi32> to vector<16x128xi32>
    %39 = vector.broadcast %7 : vector<1x128xi32> to vector<16x128xi32>
    %40 = arith.cmpi eq, %38, %39 : vector<16x128xi32>
    %41 = arith.extui %40 : vector<16x128xi1> to vector<16x128xi32>
    %42 = arith.sitofp %41 : vector<16x128xi32> to vector<16x128xf32>
    %43 = arith.addf %36, %42 : vector<16x128xf32>
    %44 = vector.extract_strided_slice %3 {offsets = [0, 5], sizes = [16, 1], strides = [1, 1]} : vector<16x16xi32> to vector<16x1xi32>
    %45 = vector.broadcast %44 : vector<16x1xi32> to vector<16x128xi32>
    %46 = vector.broadcast %7 : vector<1x128xi32> to vector<16x128xi32>
    %47 = arith.cmpi eq, %45, %46 : vector<16x128xi32>
    %48 = arith.extui %47 : vector<16x128xi1> to vector<16x128xi32>
    %49 = arith.sitofp %48 : vector<16x128xi32> to vector<16x128xf32>
    %50 = arith.addf %43, %49 : vector<16x128xf32>
    %51 = vector.extract_strided_slice %3 {offsets = [0, 6], sizes = [16, 1], strides = [1, 1]} : vector<16x16xi32> to vector<16x1xi32>
    %52 = vector.broadcast %51 : vector<16x1xi32> to vector<16x128xi32>
    %53 = vector.broadcast %7 : vector<1x128xi32> to vector<16x128xi32>
    %54 = arith.cmpi eq, %52, %53 : vector<16x128xi32>
    %55 = arith.extui %54 : vector<16x128xi1> to vector<16x128xi32>
    %56 = arith.sitofp %55 : vector<16x128xi32> to vector<16x128xf32>
    %57 = arith.addf %50, %56 : vector<16x128xf32>
    %58 = vector.extract_strided_slice %3 {offsets = [0, 7], sizes = [16, 1], strides = [1, 1]} : vector<16x16xi32> to vector<16x1xi32>
    %59 = vector.broadcast %58 : vector<16x1xi32> to vector<16x128xi32>
    %60 = vector.broadcast %7 : vector<1x128xi32> to vector<16x128xi32>
    %61 = arith.cmpi eq, %59, %60 : vector<16x128xi32>
    %62 = arith.extui %61 : vector<16x128xi1> to vector<16x128xi32>
    %63 = arith.sitofp %62 : vector<16x128xi32> to vector<16x128xf32>
    %64 = arith.addf %57, %63 : vector<16x128xf32>
    %65 = vector.extract_strided_slice %3 {offsets = [0, 8], sizes = [16, 1], strides = [1, 1]} : vector<16x16xi32> to vector<16x1xi32>
    %66 = vector.broadcast %65 : vector<16x1xi32> to vector<16x128xi32>
    %67 = vector.broadcast %7 : vector<1x128xi32> to vector<16x128xi32>
    %68 = arith.cmpi eq, %66, %67 : vector<16x128xi32>
    %69 = arith.extui %68 : vector<16x128xi1> to vector<16x128xi32>
    %70 = arith.sitofp %69 : vector<16x128xi32> to vector<16x128xf32>
    %71 = arith.addf %64, %70 : vector<16x128xf32>
    %72 = vector.extract_strided_slice %3 {offsets = [0, 9], sizes = [16, 1], strides = [1, 1]} : vector<16x16xi32> to vector<16x1xi32>
    %73 = vector.broadcast %72 : vector<16x1xi32> to vector<16x128xi32>
    %74 = vector.broadcast %7 : vector<1x128xi32> to vector<16x128xi32>
    %75 = arith.cmpi eq, %73, %74 : vector<16x128xi32>
    %76 = arith.extui %75 : vector<16x128xi1> to vector<16x128xi32>
    %77 = arith.sitofp %76 : vector<16x128xi32> to vector<16x128xf32>
    %78 = arith.addf %71, %77 : vector<16x128xf32>
    %79 = vector.extract_strided_slice %3 {offsets = [0, 10], sizes = [16, 1], strides = [1, 1]} : vector<16x16xi32> to vector<16x1xi32>
    %80 = vector.broadcast %79 : vector<16x1xi32> to vector<16x128xi32>
    %81 = vector.broadcast %7 : vector<1x128xi32> to vector<16x128xi32>
    %82 = arith.cmpi eq, %80, %81 : vector<16x128xi32>
    %83 = arith.extui %82 : vector<16x128xi1> to vector<16x128xi32>
    %84 = arith.sitofp %83 : vector<16x128xi32> to vector<16x128xf32>
    %85 = arith.addf %78, %84 : vector<16x128xf32>
    %86 = vector.extract_strided_slice %3 {offsets = [0, 11], sizes = [16, 1], strides = [1, 1]} : vector<16x16xi32> to vector<16x1xi32>
    %87 = vector.broadcast %86 : vector<16x1xi32> to vector<16x128xi32>
    %88 = vector.broadcast %7 : vector<1x128xi32> to vector<16x128xi32>
    %89 = arith.cmpi eq, %87, %88 : vector<16x128xi32>
    %90 = arith.extui %89 : vector<16x128xi1> to vector<16x128xi32>
    %91 = arith.sitofp %90 : vector<16x128xi32> to vector<16x128xf32>
    %92 = arith.addf %85, %91 : vector<16x128xf32>
    %93 = vector.extract_strided_slice %3 {offsets = [0, 12], sizes = [16, 1], strides = [1, 1]} : vector<16x16xi32> to vector<16x1xi32>
    %94 = vector.broadcast %93 : vector<16x1xi32> to vector<16x128xi32>
    %95 = vector.broadcast %7 : vector<1x128xi32> to vector<16x128xi32>
    %96 = arith.cmpi eq, %94, %95 : vector<16x128xi32>
    %97 = arith.extui %96 : vector<16x128xi1> to vector<16x128xi32>
    %98 = arith.sitofp %97 : vector<16x128xi32> to vector<16x128xf32>
    %99 = arith.addf %92, %98 : vector<16x128xf32>
    %100 = vector.extract_strided_slice %3 {offsets = [0, 13], sizes = [16, 1], strides = [1, 1]} : vector<16x16xi32> to vector<16x1xi32>
    %101 = vector.broadcast %100 : vector<16x1xi32> to vector<16x128xi32>
    %102 = vector.broadcast %7 : vector<1x128xi32> to vector<16x128xi32>
    %103 = arith.cmpi eq, %101, %102 : vector<16x128xi32>
    %104 = arith.extui %103 : vector<16x128xi1> to vector<16x128xi32>
    %105 = arith.sitofp %104 : vector<16x128xi32> to vector<16x128xf32>
    %106 = arith.addf %99, %105 : vector<16x128xf32>
    %107 = vector.extract_strided_slice %3 {offsets = [0, 14], sizes = [16, 1], strides = [1, 1]} : vector<16x16xi32> to vector<16x1xi32>
    %108 = vector.broadcast %107 : vector<16x1xi32> to vector<16x128xi32>
    %109 = vector.broadcast %7 : vector<1x128xi32> to vector<16x128xi32>
    %110 = arith.cmpi eq, %108, %109 : vector<16x128xi32>
    %111 = arith.extui %110 : vector<16x128xi1> to vector<16x128xi32>
    %112 = arith.sitofp %111 : vector<16x128xi32> to vector<16x128xf32>
    %113 = arith.addf %106, %112 : vector<16x128xf32>
    %114 = vector.extract_strided_slice %3 {offsets = [0, 15], sizes = [16, 1], strides = [1, 1]} : vector<16x16xi32> to vector<16x1xi32>
    %115 = vector.broadcast %114 : vector<16x1xi32> to vector<16x128xi32>
    %116 = vector.broadcast %7 : vector<1x128xi32> to vector<16x128xi32>
    %117 = arith.cmpi eq, %115, %116 : vector<16x128xi32>
    %118 = arith.extui %117 : vector<16x128xi1> to vector<16x128xi32>
    %119 = arith.sitofp %118 : vector<16x128xi32> to vector<16x128xf32>
    %120 = arith.addf %113, %119 : vector<16x128xf32>
    %c0_2 = arith.constant 0 : index
    %c0_3 = arith.constant 0 : index
    %121 = vector.load %arg5[%c0_2, %c0_3] : memref<16x128xf32, #tpu.memory_space<vmem>>, vector<16x128xf32>
    %122 = arith.truncf %120 : vector<16x128xf32> to vector<16x128xbf16>
    %c0_4 = arith.constant 0 : index
    %c0_5 = arith.constant 0 : index
    %123 = vector.load %arg3[%c0_4, %c0_5] : memref<128x128xbf16, #tpu.memory_space<vmem>>, vector<128x128xbf16>
    %cst_6 = arith.constant dense<0.000000e+00> : vector<16x128xf32>
    %124 = tpu.matmul %122, %123, %cst_6 {dimension_numbers = #tpu.dot_dimension_numbers<[1], [0], [0], [1], [0, 0, 1, 1], [], []>} : vector<16x128xbf16>, vector<128x128xbf16>, vector<16x128xf32> -> vector<16x128xf32>
    %125 = arith.addf %121, %124 : vector<16x128xf32>
    %c0_7 = arith.constant 0 : index
    %c0_8 = arith.constant 0 : index
    %126 = vector.load %arg5[%c0_7, %c0_8] : memref<16x128xf32, #tpu.memory_space<vmem>>, vector<16x128xf32>
    tpu.vector_store %arg5[%c0_7, %c0_8], %125 {strides = array<i32>} : memref<16x128xf32, #tpu.memory_space<vmem>>, vector<16x128xf32>,
    %c0_i32_9 = arith.constant 0 : i32
    %127 = arith.cmpi eq, %arg1, %c0_i32_9 : i32
    %128 = arith.extui %127 : i1 to i32
    %c0_i32_10 = arith.constant 0 : i32
    %129 = arith.cmpi ne, %128, %c0_i32_10 : i32
    scf.if %129 {
      %c0_i32_11 = arith.constant 0 : i32
      %130 = vector.broadcast %c0_i32_11 : i32 to vector<16x16xi32>
      %131 = arith.cmpi sgt, %3, %130 : vector<16x16xi32>
      %132 = arith.extui %131 : vector<16x16xi1> to vector<16x16xi32>
      %133 = arith.sitofp %132 : vector<16x16xi32> to vector<16x16xf32>
      %cst_12 = arith.constant dense<0.000000e+00> : vector<16xf32>
      %134 = vector.multi_reduction <add>, %133, %cst_12 [1] : vector<16x16xf32> to vector<16xf32>
      %135 = vector.shape_cast %134 : vector<16xf32> to vector<16x1xf32>
      %cst_13 = arith.constant 1.000000e+00 : f32
      %136 = vector.broadcast %cst_13 : f32 to vector<16x1xf32>
      %137 = arith.maximumf %135, %136 : vector<16x1xf32>
      %138 = tpu.reciprocal %137 {approx = true} : vector<16x1xf32> -> vector<16x1xf32>
      %c0_14 = arith.constant 0 : index
      %c0_15 = arith.constant 0 : index
      %139 = vector.load %arg5[%c0_14, %c0_15] : memref<16x128xf32, #tpu.memory_space<vmem>>, vector<16x128xf32>
      %140 = vector.broadcast %138 : vector<16x1xf32> to vector<16x128xf32>
      %141 = arith.mulf %139, %140 : vector<16x128xf32>
      %c0_16 = arith.constant 0 : index
      %c0_17 = arith.constant 0 : index
      %142 = vector.load %arg4[%c0_16, %c0_17] : memref<16x128xf32, #tpu.memory_space<vmem>>, vector<16x128xf32>
      tpu.vector_store %arg4[%c0_16, %c0_17], %141 {strides = array<i32>} : memref<16x128xf32, #tpu.memory_space<vmem>>, vector<16x128xf32>,
    } else {
    }
    return
  }
  func.func @transform_0(%arg0: i32, %arg1: i32) -> (i32, i32) {
    %c0_i32 = arith.constant 0 : i32
    %c0_i32_0 = arith.constant 0 : i32
    return %arg0, %c0_i32 : i32, i32
  }
  func.func @transform_1(%arg0: i32, %arg1: i32) -> (i32, i32) {
    %c0_i32 = arith.constant 0 : i32
    %c0_i32_0 = arith.constant 0 : i32
    return %arg1, %c0_i32 : i32, i32
  }
  func.func @transform_2(%arg0: i32, %arg1: i32) -> (i32, i32) {
    %c0_i32 = arith.constant 0 : i32
    %c0_i32_0 = arith.constant 0 : i32
    return %arg0, %c0_i32 : i32, i32
  }
}

</mosaic_0001>

<llo_original>
// kernel: tpu_custom_call.1
$region0: #{tpu_custom_call.1}
  #allocation0 [shape = 'u32[]', space=smem, size = 0x4, offset = 0x4, fixed_abs, tag = 'smem constant byte address 0x4 - core index']
  #allocation1 [shape = 'u32[144,128]{1,0:T(1,128)}', space=vmem, size = 0x12000, scoped, tag = 'internal scratch']
  #allocation2 [shape = 'f32[16,128]{1,0:T(8,128)}', space=vmem, size = 0x2000, scoped, tag = 'scratch operand']
  %s0 = inlined_call_operand.hbm [shape: s32[16,16], index: 0, kind: input, shape index: {}]
  %s1 = inlined_call_operand.hbm [shape: bf16[128,128], index: 1, kind: input, shape index: {}]
  %s2 = inlined_call_operand.hbm [shape: f32[16,128], index: 2, kind: output, shape index: {}]
  %s3 = sld [smem:[#allocation0]]
  $region34: #{tpu_custom_call.1} parent=0
    _
  %s5 = ssub.s32 1, %s3
  %s6 = scalar_select 0, %s5, %s3
  $region1: #{tpu_custom_call.1} parent=0
    #allocation3 [shape = 'u8[8192]{0}', space=vmem, size = 0x2000, scoped, tag = 'input window, operand 0, single buffered']
    #allocation4 [shape = 's32[1]{0}', space=sflag, size = 0x4, scoped, tag = 'scoped memory for tpu_custom_call.1']
    #allocation5 [shape = 's32[1]{0}', space=sflag, size = 0x4, scoped, tag = 'scoped memory for tpu_custom_call.1']
    #allocation6 [shape = 'u8[32768]{0}', space=vmem, size = 0x8000, scoped, tag = 'input window, operand 1, single buffered']
    #allocation7 [shape = 's32[1]{0}', space=sflag, size = 0x4, scoped, tag = 'scoped memory for tpu_custom_call.1']
    #allocation8 [shape = 'u8[8192]{0}', space=vmem, size = 0x2000, scoped, tag = 'output window, operand 0, single buffered']
    %7 = vsyncpa [#allocation4], 0
    %8 = vsyncpa [#allocation7], 0
    %9 = vsyncpa [#allocation5], 0
    // Predicated region
    $region2: #{tpu_custom_call.1} parent=1 // pred_check
      _
    $region3: #{tpu_custom_call.1} parent=1 // pred_check_branch
      %11 = sbr.rel (0) target = $region5
    $region4: #{tpu_custom_call.1} parent=1 // pred_region
      %s13 = ssub.s32 256, 256
      %14 = vsyncadd [#allocation4], %s13
      %s15 = sshll.u32 [#allocation3], 4
      %s16 = int_to_ptr.vmem [resolvable:$true] %s15
      %21 = dma.hbm_to_vmem [thread:$0]  %s0, 256, %s16, [#allocation4], 128, 128, 8
    $region5: #{tpu_custom_call.1} parent=1 // pred_fallthru
      _
    // Predicated region
    $region6: #{tpu_custom_call.1} parent=1 // pred_check
      _
    $region7: #{tpu_custom_call.1} parent=1 // pred_check_branch
      %23 = sbr.rel (0) target = $region9
    $region8: #{tpu_custom_call.1} parent=1 // pred_region
      %s25 = ssub.s32 1024, 1024
      %26 = vsyncadd [#allocation7], %s25
      %s27 = sshll.u32 [#allocation6], 4
      %s28 = int_to_ptr.vmem [resolvable:$true] %s27
      %33 = dma.hbm_to_vmem [thread:$0]  %s1, 1024, %s28, [#allocation7], 64, 64, 4
    $region9: #{tpu_custom_call.1} parent=1 // pred_fallthru
      _
    // Predicated region
    $region10: #{tpu_custom_call.1} parent=1 // pred_check
      _
    $region11: #{tpu_custom_call.1} parent=1 // pred_check_branch
      %35 = sbr.rel (0) target = $region13
    $region12: #{tpu_custom_call.1} parent=1 // pred_region
      %36 = dma.done [#allocation4], 256
    $region13: #{tpu_custom_call.1} parent=1 // pred_fallthru
      _
    // Predicated region
    $region14: #{tpu_custom_call.1} parent=1 // pred_check
      _
    $region15: #{tpu_custom_call.1} parent=1 // pred_check_branch
      %38 = sbr.rel (0) target = $region17
    $region16: #{tpu_custom_call.1} parent=1 // pred_region
      %39 = dma.done [#allocation7], 1024
    $region17: #{tpu_custom_call.1} parent=1 // pred_fallthru
      _
    %p41 = scmp.eq.s32.totalorder 0, 0
    // Predicated region
    $region18: #{tpu_custom_call.1} parent=1 // pred_check
      %p42 = pneg %p41
    $region19: #{tpu_custom_call.1} parent=1 // pred_check_branch
      %44 = sbr.rel (%p42) target = $region21
    $region20: #{tpu_custom_call.1} parent=1 // pred_region
      %45 = vst [vmem:[#allocation2] sm:$0xff] 0.0
      %46 = vst [vmem:[#allocation2 + $0x8] sm:$0xff] 0.0
    $region21: #{tpu_custom_call.1} parent=1 // pred_fallthru
      _
    %v47 = vld [vmem:[#allocation3] sm:$0xff]
    %v48 = vld [vmem:[#allocation3 + $0x8] sm:$0xff]
    %s49 = smul.u32 0, 128
    %v50 = vlaneseq
    %v51 = vand.u32 %v50, 127
    %v52 = vstv %s49
    %v53 = vadd.s32 %v52, %v51
    %54 = vset.pattern.permute.xlu0 0
    %55 = vperm.xlu0 %54, %v47
    %v56 = vpop.permute.xlu0 %55
    %57 = vset.pattern.permute.xlu0 0
    %58 = vperm.xlu0 %57, %v48
    %v59 = vpop.permute.xlu0 %58
    %vm60 = vcmp.eq.s32.totalorder %v56, %v53
    %vm61 = vcmp.eq.s32.totalorder %v59, %v53
    %v62 = vsel %vm60, 1, 0
    %v63 = vsel %vm61, 1, 0
    %v64 = vcvt.s32.f32 %v62
    %v65 = vcvt.s32.f32 %v63
    %v66 = vadd.f32 %v64, 0.0
    %v67 = vadd.f32 %v65, 0.0
    %68 = vset.pattern.permute.xlu0 1
    %69 = vperm.xlu0 %68, %v47
    %v70 = vpop.permute.xlu0 %69
    %71 = vset.pattern.permute.xlu0 1
    %72 = vperm.xlu0 %71, %v48
    %v73 = vpop.permute.xlu0 %72
    %vm74 = vcmp.eq.s32.totalorder %v70, %v53
    %vm75 = vcmp.eq.s32.totalorder %v73, %v53
    %v76 = vsel %vm74, 1, 0
    %v77 = vsel %vm75, 1, 0
    %v78 = vcvt.s32.f32 %v76
    %v79 = vcvt.s32.f32 %v77
    %v80 = vadd.f32 %v66, %v78
    %v81 = vadd.f32 %v67, %v79
    %82 = vset.pattern.permute.xlu0 2
    %83 = vperm.xlu0 %82, %v47
    %v84 = vpop.permute.xlu0 %83
    %85 = vset.pattern.permute.xlu0 2
    %86 = vperm.xlu0 %85, %v48
    %v87 = vpop.permute.xlu0 %86
    %vm88 = vcmp.eq.s32.totalorder %v84, %v53
    %vm89 = vcmp.eq.s32.totalorder %v87, %v53
    %v90 = vsel %vm88, 1, 0
    %v91 = vsel %vm89, 1, 0
    %v92 = vcvt.s32.f32 %v90
    %v93 = vcvt.s32.f32 %v91
    %v94 = vadd.f32 %v80, %v92
    %v95 = vadd.f32 %v81, %v93
    %96 = vset.pattern.permute.xlu0 3
    %97 = vperm.xlu0 %96, %v47
    %v98 = vpop.permute.xlu0 %97
    %99 = vset.pattern.permute.xlu0 3
    %100 = vperm.xlu0 %99, %v48
    %v101 = vpop.permute.xlu0 %100
    %vm102 = vcmp.eq.s32.totalorder %v98, %v53
    %vm103 = vcmp.eq.s32.totalorder %v101, %v53
    %v104 = vsel %vm102, 1, 0
    %v105 = vsel %vm103, 1, 0
    %v106 = vcvt.s32.f32 %v104
    %v107 = vcvt.s32.f32 %v105
    %v108 = vadd.f32 %v94, %v106
    %v109 = vadd.f32 %v95, %v107
    %110 = vset.pattern.permute.xlu0 4
    %111 = vperm.xlu0 %110, %v47
    %v112 = vpop.permute.xlu0 %111
    %113 = vset.pattern.permute.xlu0 4
    %114 = vperm.xlu0 %113, %v48
    %v115 = vpop.permute.xlu0 %114
    %vm116 = vcmp.eq.s32.totalorder %v112, %v53
    %vm117 = vcmp.eq.s32.totalorder %v115, %v53
    %v118 = vsel %vm116, 1, 0
    %v119 = vsel %vm117, 1, 0
    %v120 = vcvt.s32.f32 %v118
    %v121 = vcvt.s32.f32 %v119
    %v122 = vadd.f32 %v108, %v120
    %v123 = vadd.f32 %v109, %v121
    %124 = vset.pattern.permute.xlu0 5
    %125 = vperm.xlu0 %124, %v47
    %v126 = vpop.permute.xlu0 %125
    %127 = vset.pattern.permute.xlu0 5
    %128 = vperm.xlu0 %127, %v48
    %v129 = vpop.permute.xlu0 %128
    %vm130 = vcmp.eq.s32.totalorder %v126, %v53
    %vm131 = vcmp.eq.s32.totalorder %v129, %v53
    %v132 = vsel %vm130, 1, 0
    %v133 = vsel %vm131, 1, 0
    %v134 = vcvt.s32.f32 %v132
    %v135 = vcvt.s32.f32 %v133
    %v136 = vadd.f32 %v122, %v134
    %v137 = vadd.f32 %v123, %v135
    %138 = vset.pattern.permute.xlu0 6
    %139 = vperm.xlu0 %138, %v47
    %v140 = vpop.permute.xlu0 %139
    %141 = vset.pattern.permute.xlu0 6
    %142 = vperm.xlu0 %141, %v48
    %v143 = vpop.permute.xlu0 %142
    %vm144 = vcmp.eq.s32.totalorder %v140, %v53
    %vm145 = vcmp.eq.s32.totalorder %v143, %v53
    %v146 = vsel %vm144, 1, 0
    %v147 = vsel %vm145, 1, 0
    %v148 = vcvt.s32.f32 %v146
    %v149 = vcvt.s32.f32 %v147
    %v150 = vadd.f32 %v136, %v148
    %v151 = vadd.f32 %v137, %v149
    %152 = vset.pattern.permute.xlu0 7
    %153 = vperm.xlu0 %152, %v47
    %v154 = vpop.permute.xlu0 %153
    %155 = vset.pattern.permute.xlu0 7
    %156 = vperm.xlu0 %155, %v48
    %v157 = vpop.permute.xlu0 %156
    %vm158 = vcmp.eq.s32.totalorder %v154, %v53
    %vm159 = vcmp.eq.s32.totalorder %v157, %v53
    %v160 = vsel %vm158, 1, 0
    %v161 = vsel %vm159, 1, 0
    %v162 = vcvt.s32.f32 %v160
    %v163 = vcvt.s32.f32 %v161
    %v164 = vadd.f32 %v150, %v162
    %v165 = vadd.f32 %v151, %v163
    %166 = vset.pattern.permute.xlu0 8
    %167 = vperm.xlu0 %166, %v47
    %v168 = vpop.permute.xlu0 %167
    %169 = vset.pattern.permute.xlu0 8
    %170 = vperm.xlu0 %169, %v48
    %v171 = vpop.permute.xlu0 %170
    %vm172 = vcmp.eq.s32.totalorder %v168, %v53
    %vm173 = vcmp.eq.s32.totalorder %v171, %v53
    %v174 = vsel %vm172, 1, 0
    %v175 = vsel %vm173, 1, 0
    %v176 = vcvt.s32.f32 %v174
    %v177 = vcvt.s32.f32 %v175
    %v178 = vadd.f32 %v164, %v176
    %v179 = vadd.f32 %v165, %v177
    %180 = vset.pattern.permute.xlu0 9
    %181 = vperm.xlu0 %180, %v47
    %v182 = vpop.permute.xlu0 %181
    %183 = vset.pattern.permute.xlu0 9
    %184 = vperm.xlu0 %183, %v48
    %v185 = vpop.permute.xlu0 %184
    %vm186 = vcmp.eq.s32.totalorder %v182, %v53
    %vm187 = vcmp.eq.s32.totalorder %v185, %v53
    %v188 = vsel %vm186, 1, 0
    %v189 = vsel %vm187, 1, 0
    %v190 = vcvt.s32.f32 %v188
    %v191 = vcvt.s32.f32 %v189
    %v192 = vadd.f32 %v178, %v190
    %v193 = vadd.f32 %v179, %v191
    %194 = vset.pattern.permute.xlu0 10
    %195 = vperm.xlu0 %194, %v47
    %v196 = vpop.permute.xlu0 %195
    %197 = vset.pattern.permute.xlu0 10
    %198 = vperm.xlu0 %197, %v48
    %v199 = vpop.permute.xlu0 %198
    %vm200 = vcmp.eq.s32.totalorder %v196, %v53
    %vm201 = vcmp.eq.s32.totalorder %v199, %v53
    %v202 = vsel %vm200, 1, 0
    %v203 = vsel %vm201, 1, 0
    %v204 = vcvt.s32.f32 %v202
    %v205 = vcvt.s32.f32 %v203
    %v206 = vadd.f32 %v192, %v204
    %v207 = vadd.f32 %v193, %v205
    %208 = vset.pattern.permute.xlu0 11
    %209 = vperm.xlu0 %208, %v47
    %v210 = vpop.permute.xlu0 %209
    %211 = vset.pattern.permute.xlu0 11
    %212 = vperm.xlu0 %211, %v48
    %v213 = vpop.permute.xlu0 %212
    %vm214 = vcmp.eq.s32.totalorder %v210, %v53
    %vm215 = vcmp.eq.s32.totalorder %v213, %v53
    %v216 = vsel %vm214, 1, 0
    %v217 = vsel %vm215, 1, 0
    %v218 = vcvt.s32.f32 %v216
    %v219 = vcvt.s32.f32 %v217
    %v220 = vadd.f32 %v206, %v218
    %v221 = vadd.f32 %v207, %v219
    %222 = vset.pattern.permute.xlu0 12
    %223 = vperm.xlu0 %222, %v47
    %v224 = vpop.permute.xlu0 %223
    %225 = vset.pattern.permute.xlu0 12
    %226 = vperm.xlu0 %225, %v48
    %v227 = vpop.permute.xlu0 %226
    %vm228 = vcmp.eq.s32.totalorder %v224, %v53
    %vm229 = vcmp.eq.s32.totalorder %v227, %v53
    %v230 = vsel %vm228, 1, 0
    %v231 = vsel %vm229, 1, 0
    %v232 = vcvt.s32.f32 %v230
    %v233 = vcvt.s32.f32 %v231
    %v234 = vadd.f32 %v220, %v232
    %v235 = vadd.f32 %v221, %v233
    %236 = vset.pattern.permute.xlu0 13
    %237 = vperm.xlu0 %236, %v47
    %v238 = vpop.permute.xlu0 %237
    %239 = vset.pattern.permute.xlu0 13
    %240 = vperm.xlu0 %239, %v48
    %v241 = vpop.permute.xlu0 %240
    %vm242 = vcmp.eq.s32.totalorder %v238, %v53
    %vm243 = vcmp.eq.s32.totalorder %v241, %v53
    %v244 = vsel %vm242, 1, 0
    %v245 = vsel %vm243, 1, 0
    %v246 = vcvt.s32.f32 %v244
    %v247 = vcvt.s32.f32 %v245
    %v248 = vadd.f32 %v234, %v246
    %v249 = vadd.f32 %v235, %v247
    %250 = vset.pattern.permute.xlu0 14
    %251 = vperm.xlu0 %250, %v47
    %v252 = vpop.permute.xlu0 %251
    %253 = vset.pattern.permute.xlu0 14
    %254 = vperm.xlu0 %253, %v48
    %v255 = vpop.permute.xlu0 %254
    %vm256 = vcmp.eq.s32.totalorder %v252, %v53
    %vm257 = vcmp.eq.s32.totalorder %v255, %v53
    %v258 = vsel %vm256, 1, 0
    %v259 = vsel %vm257, 1, 0
    %v260 = vcvt.s32.f32 %v258
    %v261 = vcvt.s32.f32 %v259
    %v262 = vadd.f32 %v248, %v260
    %v263 = vadd.f32 %v249, %v261
    %264 = vset.pattern.permute.xlu0 15
    %265 = vperm.xlu0 %264, %v47
    %v266 = vpop.permute.xlu0 %265
    %267 = vset.pattern.permute.xlu0 15
    %268 = vperm.xlu0 %267, %v48
    %v269 = vpop.permute.xlu0 %268
    %vm270 = vcmp.eq.s32.totalorder %v266, %v53
    %vm271 = vcmp.eq.s32.totalorder %v269, %v53
    %v272 = vsel %vm270, 1, 0
    %v273 = vsel %vm271, 1, 0
    %v274 = vcvt.s32.f32 %v272
    %v275 = vcvt.s32.f32 %v273
    %v276 = vadd.f32 %v262, %v274
    %v277 = vadd.f32 %v263, %v275
    %v278 = vld [vmem:[#allocation2] sm:$0xff]
    %v279 = vld [vmem:[#allocation2 + $0x8] sm:$0xff]
    %v280 = vpack.c.bf16 %v277, %v276
    %v281 = vld [vmem:[#allocation6] sm:$0xf]
    %v282 = vld [vmem:[#allocation6 + $0x4] sm:$0xf]
    %v283 = vld [vmem:[#allocation6 + $0x8] sm:$0xf]
    %v284 = vld [vmem:[#allocation6 + $0xc] sm:$0xf]
    %v285 = vld [vmem:[#allocation6 + $0x10] sm:$0xf]
    %v286 = vld [vmem:[#allocation6 + $0x14] sm:$0xf]
    %v287 = vld [vmem:[#allocation6 + $0x18] sm:$0xf]
    %v288 = vld [vmem:[#allocation6 + $0x1c] sm:$0xf]
    %v289 = vld [vmem:[#allocation6 + $0x20] sm:$0xf]
    %v290 = vld [vmem:[#allocation6 + $0x24] sm:$0xf]
    %v291 = vld [vmem:[#allocation6 + $0x28] sm:$0xf]
    %v292 = vld [vmem:[#allocation6 + $0x2c] sm:$0xf]
    %v293 = vld [vmem:[#allocation6 + $0x30] sm:$0xf]
    %v294 = vld [vmem:[#allocation6 + $0x34] sm:$0xf]
    %v295 = vld [vmem:[#allocation6 + $0x38] sm:$0xf]
    %v296 = vld [vmem:[#allocation6 + $0x3c] sm:$0xf]
    %v313 = vunpack.c.l.b16 %v281
    %v314 = vunpack.c.l.b16 %v282
    %v315 = vunpack.c.l.b16 %v283
    %v316 = vunpack.c.l.b16 %v284
    %v317 = vunpack.c.l.b16 %v285
    %v318 = vunpack.c.l.b16 %v286
    %v319 = vunpack.c.l.b16 %v287
    %v320 = vunpack.c.l.b16 %v288
    %v321 = vunpack.c.l.b16 %v289
    %v322 = vunpack.c.l.b16 %v290
    %v323 = vunpack.c.l.b16 %v291
    %v324 = vunpack.c.l.b16 %v292
    %v325 = vunpack.c.l.b16 %v293
    %v326 = vunpack.c.l.b16 %v294
    %v327 = vunpack.c.l.b16 %v295
    %v328 = vunpack.c.l.b16 %v296
    %v329 = vpack.c.b16 %v314, %v313
    %v330 = vpack.c.b16 %v316, %v315
    %v331 = vpack.c.b16 %v318, %v317
    %v332 = vpack.c.b16 %v320, %v319
    %v333 = vpack.c.b16 %v322, %v321
    %v334 = vpack.c.b16 %v324, %v323
    %v335 = vpack.c.b16 %v326, %v325
    %v336 = vpack.c.b16 %v328, %v327
    %345 = vmatprep.subr.bf16.mxu0 0
    %346 = vmatpush1.bf16.msra.mxu0 %v329
    %347 = vmatprep.subr.bf16.mxu0 0
    %348 = vmatpush1.bf16.msra.mxu0 %v330
    %349 = vmatprep.subr.bf16.mxu0 0
    %350 = vmatpush1.bf16.msra.mxu0 %v331
    %351 = vmatprep.subr.bf16.mxu0 0
    %352 = vmatpush1.bf16.msra.mxu0 %v332
    %353 = vmatprep.subr.bf16.mxu0 0
    %354 = vmatpush1.bf16.msra.mxu0 %v333
    %355 = vmatprep.subr.bf16.mxu0 0
    %356 = vmatpush1.bf16.msra.mxu0 %v334
    %357 = vmatprep.subr.bf16.mxu0 0
    %358 = vmatpush1.bf16.msra.mxu0 %v335
    %359 = vmatprep.subr.bf16.mxu0 0
    %360 = vmatpush1.bf16.msra.mxu0 %v336
    %361 = vmatprep.subr.bf16.mxu0 0
    %362 = vmatpush1.bf16.msra.mxu0 0
    %363 = vmatprep.subr.bf16.mxu0 0
    %364 = vmatpush1.bf16.msra.mxu0 0
    %365 = vmatprep.subr.bf16.mxu0 0
    %366 = vmatpush1.bf16.msra.mxu0 0
    %367 = vmatprep.subr.bf16.mxu0 0
    %368 = vmatpush1.bf16.msra.mxu0 0
    %369 = vmatprep.subr.bf16.mxu0 0
    %370 = vmatpush1.bf16.msra.mxu0 0
    %371 = vmatprep.subr.bf16.mxu0 0
    %372 = vmatpush1.bf16.msra.mxu0 0
    %373 = vmatprep.subr.bf16.mxu0 0
    %374 = vmatpush1.bf16.msra.mxu0 0
    %375 = vmatprep.subr.bf16.mxu0 0
    %376 = vmatpush1.bf16.msra.mxu0 0
    %377 = vmatprep.mubr.bf16.mxu0 0
    %378 = vmatmul.mubr.bf16.gmra.mrb[0].mxu0 %v280
    %v379 = vpop.f32.mrb[0].mxu0
    %v380 = vadd.f32 0.0, %v379
    %v381 = vpop.f32.mrb[0].mxu0
    %v382 = vpop.f32.mrb[0].mxu0
    %v383 = vadd.f32 0.0, %v382
    %v384 = vpop.f32.mrb[0].mxu0
    %385 = vdwg.mxu0
    %v386 = vadd.f32 %v278, %v380
    %v387 = vadd.f32 %v279, %v383
    %388 = vst [vmem:[#allocation2] sm:$0xff] %v386
    %389 = vst [vmem:[#allocation2 + $0x8] sm:$0xff] %v387
    // Predicated region
    $region22: #{tpu_custom_call.1} parent=1 // pred_check
      %p390 = pneg %p41
    $region23: #{tpu_custom_call.1} parent=1 // pred_check_branch
      %392 = sbr.rel (%p390) target = $region25
    $region24: #{tpu_custom_call.1} parent=1 // pred_region
      %vm393 = vcmp.gt.s32.totalorder %v47, 0
      %vm394 = vcmp.gt.s32.totalorder %v48, 0
      %v395 = vsel %vm393, 1, 0
      %v396 = vsel %vm394, 1, 0
      %v397 = vcvt.s32.f32 %v395
      %v398 = vcvt.s32.f32 %v396
      %vm399 = vcmask 130048
      %v400 = vsel %vm399, %v397, 0.0
      %401 = vadd.xlane.f32.xlu0 %v400
      %v402 = vpop.xlane.xlu0 %401
      %v403 = vsel %vm399, %v398, 0.0
      %404 = vadd.xlane.f32.xlu0 %v403
      %v405 = vpop.xlane.xlu0 %404
      %v406 = vmax.f32 %v402, 1.0
      %v407 = vmax.f32 %v405, 1.0
      %v408 = vrcp.pop %v406
      %v409 = vrcp.pop %v407
      %v410 = vld [vmem:[#allocation2] sm:$0xff]
      %v411 = vld [vmem:[#allocation2 + $0x8] sm:$0xff]
      %v412 = vmul.f32 %v410, %v408
      %v413 = vmul.f32 %v411, %v409
      %414 = vst [vmem:[#allocation8] sm:$0xff] %v412
      %415 = vst [vmem:[#allocation8 + $0x8] sm:$0xff] %v413
    $region25: #{tpu_custom_call.1} parent=1 // pred_fallthru
      _
    // Predicated region
    $region26: #{tpu_custom_call.1} parent=1 // pred_check
      _
    $region27: #{tpu_custom_call.1} parent=1 // pred_check_branch
      %417 = sbr.rel (0) target = $region29
    $region28: #{tpu_custom_call.1} parent=1 // pred_region
      %s419 = ssub.s32 256, 256
      %420 = vsyncadd [#allocation5], %s419
      %s421 = sshll.u32 [#allocation8], 4
      %s422 = int_to_ptr.vmem [resolvable:$true] %s421
      %427 = dma.vmem_to_hbm [thread:$0]  %s422, 256, %s2, [#allocation5], 128, 128, 8
    $region29: #{tpu_custom_call.1} parent=1 // pred_fallthru
      _
    // Predicated region
    $region30: #{tpu_custom_call.1} parent=1 // pred_check
      _
    $region31: #{tpu_custom_call.1} parent=1 // pred_check_branch
      %429 = sbr.rel (0) target = $region33
    $region32: #{tpu_custom_call.1} parent=1 // pred_region
      %430 = dma.done [#allocation5], 256
    $region33: #{tpu_custom_call.1} parent=1 // pred_fallthru
      _
    %431 = vsyncpa [#allocation4], 1
    %432 = vsyncpa [#allocation7], 1
    %433 = vsyncpa [#allocation5], 1

</llo_original>
